<compile_context>
chip_gen: v6e
topology: v6e:2x2x1
jax: 0.10.0
libtpu: 0.0.40
codegen_flags: <defaults>
</compile_context>

<pallas_src>
import jax
import jax.numpy as jnp
import numpy as np
from jax.experimental import pallas as pl
from jax.experimental.pallas import tpu as pltpu

# ---- model configuration (mirrors the PyTorch module's __init__ args) ----
D_IN = 6                       # input feature dim
HIDDEN = 32                    # cfg_density hidden dim
NUM_GRID = 10                  # density estimator grid count (output dim = NUM_GRID + 1)
DEGREE = 2                     # truncated-power spline degree
KNOTS = (0.33, 0.66)           # spline knots
D_BASIS = DEGREE + 1 + len(KNOTS)   # = 5 basis functions
Q_HIDDEN = 32                  # Dynamic_FC hidden dim
# cfg_density = [(D_IN, HIDDEN, 1, 'relu'), (HIDDEN, HIDDEN, 1, 'relu')]
# cfg         = [(HIDDEN, Q_HIDDEN, 1, 'relu'), (Q_HIDDEN, 1, 1, 'id')]


def _round_up(n, m):
    return ((n + m - 1) // m) * m


def vcnet_kernel(t_ref, x_ref,
                 w0t_ref, b0_ref, w1t_ref, b1_ref,
                 wdt_ref, bd_ref,
                 wq1s_ref, bq1s_ref, wq2s_ref, bq2s_ref,
                 o_ref):
    # Batch lives on the 128-lane axis; feature dims live on sublanes.
    t = t_ref[...]                      # (1, TN)
    x = x_ref[...]                      # (D_IN, TN)
    tn = t.shape[1]

    # ---------------- hidden_features: (Linear + ReLU) x 2 ----------------
    h = jnp.dot(w0t_ref[...], x, preferred_element_type=jnp.float32) + b0_ref[...]
    h = jnp.maximum(h, 0.0)
    h = jnp.dot(w1t_ref[...], h, preferred_element_type=jnp.float32) + b1_ref[...]
    h = jnp.maximum(h, 0.0)             # (HIDDEN, TN)

    # ------------- Density_Block: softmax over grid + interpolation --------
    logits = jnp.dot(wdt_ref[...], h, preferred_element_type=jnp.float32) + bd_ref[...]
    m = jnp.max(logits, axis=0, keepdims=True)
    e = jnp.exp(logits - m)
    probs = e / jnp.sum(e, axis=0, keepdims=True)      # (NUM_GRID + 1, TN)

    tz = t * float(NUM_GRID)
    U = jnp.ceil(tz)
    inter = 1.0 - (U - tz)
    L = U - 1.0
    L = jnp.where(L < 0.0, L + 1.0, L)                 # L += (L < 0)
    Li = jnp.clip(L, 0.0, float(NUM_GRID)).astype(jnp.int32)   # (1, TN)
    Ui = jnp.clip(U, 0.0, float(NUM_GRID)).astype(jnp.int32)   # (1, TN)
    row = jax.lax.broadcasted_iota(jnp.int32, probs.shape, 0)
    L_out = jnp.sum(jnp.where(row == Li, probs, 0.0), axis=0, keepdims=True)
    U_out = jnp.sum(jnp.where(row == Ui, probs, 0.0), axis=0, keepdims=True)
    g = L_out + (U_out - L_out) * inter                # (1, TN)

    # --------------- Truncated_power basis of the treatment t --------------
    basis = [jnp.ones_like(t), t, t * t]
    for kn in KNOTS:
        r = jnp.maximum(t - kn, 0.0)
        basis.append(r * r)                            # degree == 2; 5 rows of (1, TN)

    # -------- Dynamic_FC layer 1: one fused MXU matmul + 5 VPU FMAs --------
    # tmp1[k*Q + o, n] = sum_i W1[i, o, k] * h[i, n] + bias1[o, k]
    tmp1 = (jnp.dot(wq1s_ref[...], h, preferred_element_type=jnp.float32)
            + bq1s_ref[...])                           # (D_BASIS*Q_HIDDEN, TN)
    out1 = jnp.zeros((Q_HIDDEN, tn), jnp.float32)
    for k in range(D_BASIS):
        out1 = out1 + tmp1[k * Q_HIDDEN:(k + 1) * Q_HIDDEN, :] * basis[k]
    out1 = jnp.maximum(out1, 0.0)                      # (Q_HIDDEN, TN)

    # ---------- Dynamic_FC last layer: fused matmul + sublane reduce -------
    # tmp2[k, n] = sum_i W2[i, 0, k] * out1[i, n] + bias2[0, k]
    tmp2 = (jnp.dot(wq2s_ref[...], out1, preferred_element_type=jnp.float32)
            + bq2s_ref[...])                           # (D_BASIS, TN)
    basis_stack = jnp.concatenate(basis, axis=0)       # (D_BASIS, TN)
    q = jnp.sum(tmp2 * basis_stack, axis=0, keepdims=True)   # (1, TN)

    # single lane-dense store: row 0 = g, row 1 = Q
    o_ref[...] = jnp.concatenate([g, q], axis=0)       # (2, TN)


def vcnet_forward(t, x, params, tile_n=1024):
    """t: (N,), x: (N, D_IN)  ->  (g: (N,), Q: (N, 1))"""
    N = x.shape[0]
    tile = min(tile_n, _round_up(N, 128))
    n_pad = _round_up(N, tile)
    grid = (n_pad // tile,)

    # batch on lanes
    t2 = t.reshape(1, N).astype(jnp.float32)
    x2 = jnp.transpose(x.astype(jnp.float32))          # (D_IN, N)
    if n_pad != N:
        pad = n_pad - N
        t2 = jnp.pad(t2, ((0, 0), (0, pad)))
        x2 = jnp.pad(x2, ((0, 0), (0, pad)))

    # weights transposed for W^T @ X dataflow; Dynamic_FC weights pre-stacked
    w0t = jnp.transpose(params["w0"])                  # (HIDDEN, D_IN)
    b0 = params["b0"].reshape(HIDDEN, 1)
    w1t = jnp.transpose(params["w1"])                  # (HIDDEN, HIDDEN)
    b1 = params["b1"].reshape(HIDDEN, 1)
    wdt = jnp.transpose(params["wd"])                  # (NUM_GRID+1, HIDDEN)
    bd = params["bd"].reshape(NUM_GRID + 1, 1)
    wq1s = jnp.transpose(params["wq1"], (2, 1, 0)).reshape(D_BASIS * Q_HIDDEN, HIDDEN)
    bq1s = jnp.transpose(params["bq1"]).reshape(D_BASIS * Q_HIDDEN, 1)
    wq2s = jnp.transpose(params["wq2"][:, 0, :])       # (D_BASIS, Q_HIDDEN)
    bq2s = jnp.transpose(params["bq2"])                # (D_BASIS, 1)

    def col_spec(nrow):
        return pl.BlockSpec((nrow, tile), lambda i: (0, i))

    def weight_spec(shape):
        return pl.BlockSpec(shape, lambda i: (0, 0))   # VMEM-resident across grid

    in_specs = [
        col_spec(1),                                   # t
        col_spec(D_IN),                                # x
        weight_spec((HIDDEN, D_IN)), weight_spec((HIDDEN, 1)),
        weight_spec((HIDDEN, HIDDEN)), weight_spec((HIDDEN, 1)),
        weight_spec((NUM_GRID + 1, HIDDEN)), weight_spec((NUM_GRID + 1, 1)),
        weight_spec((D_BASIS * Q_HIDDEN, HIDDEN)), weight_spec((D_BASIS * Q_HIDDEN, 1)),
        weight_spec((D_BASIS, Q_HIDDEN)), weight_spec((D_BASIS, 1)),
    ]

    out = pl.pallas_call(
        vcnet_kernel,
        out_shape=jax.ShapeDtypeStruct((2, n_pad), jnp.float32),
        grid=grid,
        in_specs=in_specs,
        out_specs=col_spec(2),
        compiler_params=pltpu.CompilerParams(
            dimension_semantics=("parallel",)),
    )(t2, x2, w0t, b0, w1t, b1, wdt, bd, wq1s, bq1s, wq2s, bq2s)

    g = out[0, :N]
    Q = out[1, :N].reshape(N, 1)
    return g, Q


def vcnet_reference(t, x, params):
    """Pure-JAX reference for the same forward pass (batch-first layout)."""
    h = jax.nn.relu(x @ params["w0"] + params["b0"])
    h = jax.nn.relu(h @ params["w1"] + params["b1"])
    probs = jax.nn.softmax(h @ params["wd"] + params["bd"], axis=1)
    tz = t * NUM_GRID
    U = jnp.ceil(tz)
    inter = 1.0 - (U - tz)
    L = U - 1.0
    L = jnp.where(L < 0.0, L + 1.0, L)
    Li = L.astype(jnp.int32)
    Ui = U.astype(jnp.int32)
    n_idx = jnp.arange(x.shape[0])
    g = probs[n_idx, Li] + (probs[n_idx, Ui] - probs[n_idx, Li]) * inter
    cols = [jnp.ones_like(t), t, t * t]
    for kn in KNOTS:
        cols.append(jax.nn.relu(t - kn) ** 2)
    basis = jnp.stack(cols, axis=1)
    out1 = basis @ params["bq1"].T
    for k in range(D_BASIS):
        out1 = out1 + (h @ params["wq1"][:, :, k]) * basis[:, k:k + 1]
    out1 = jax.nn.relu(out1)
    out2 = basis @ params["bq2"].T
    for k in range(D_BASIS):
        out2 = out2 + (out1 @ params["wq2"][:, :, k]) * basis[:, k:k + 1]
    return g, out2


def init_params(key):
    ks = jax.random.split(key, 10)
    return {
        # hidden_features (nn.Linear): normal(0, 0.01) as in _initialize_weights
        "w0": 0.01 * jax.random.normal(ks[0], (D_IN, HIDDEN), jnp.float32),
        "b0": jnp.zeros((HIDDEN,), jnp.float32),
        "w1": 0.01 * jax.random.normal(ks[1], (HIDDEN, HIDDEN), jnp.float32),
        "b1": jnp.zeros((HIDDEN,), jnp.float32),
        # Density_Block: torch.rand-style uniform init
        "wd": jax.random.uniform(ks[2], (HIDDEN, NUM_GRID + 1), jnp.float32),
        "bd": jax.random.uniform(ks[3], (NUM_GRID + 1,), jnp.float32),
        # Dynamic_FC layers: torch.rand-style uniform init
        "wq1": jax.random.uniform(ks[4], (HIDDEN, Q_HIDDEN, D_BASIS), jnp.float32),
        "bq1": jax.random.uniform(ks[5], (Q_HIDDEN, D_BASIS), jnp.float32),
        "wq2": jax.random.uniform(ks[6], (Q_HIDDEN, 1, D_BASIS), jnp.float32),
        "bq2": jax.random.uniform(ks[7], (1, D_BASIS), jnp.float32),
    }


if __name__ == "__main__":
    key = jax.random.PRNGKey(0)
    k_p, k_x, k_t = jax.random.split(key, 3)
    params = init_params(k_p)

    # small single-tile check (N padded to one 128-lane tile)
    N = 8
    x = jax.random.uniform(k_x, (N, D_IN), jnp.float32)
    t = jax.random.uniform(k_t, (N,), jnp.float32)      # treatment in [0, 1)
    g, Q = vcnet_forward(t, x, params)
    g, Q = jax.block_until_ready((g, Q))
    g_ref, Q_ref = vcnet_reference(t, x, params)
    np.testing.assert_allclose(np.asarray(g), np.asarray(g_ref), rtol=1e-4, atol=1e-4)
    np.testing.assert_allclose(np.asarray(Q), np.asarray(Q_ref), rtol=1e-4, atol=1e-4)

    # multi-tile grid + padded tail check
    N2 = 300
    x2 = jax.random.uniform(jax.random.PRNGKey(1), (N2, D_IN), jnp.float32)
    t2 = jax.random.uniform(jax.random.PRNGKey(2), (N2,), jnp.float32)
    g2, Q2 = vcnet_forward(t2, x2, params, tile_n=128)
    g2, Q2 = jax.block_until_ready((g2, Q2))
    g2_ref, Q2_ref = vcnet_reference(t2, x2, params)
    np.testing.assert_allclose(np.asarray(g2), np.asarray(g2_ref), rtol=1e-4, atol=1e-4)
    np.testing.assert_allclose(np.asarray(Q2), np.asarray(Q2_ref), rtol=1e-4, atol=1e-4)

    print("KERNEL_OK")
</pallas_src>

<mosaic_0001>
module attributes {stable_mosaic.version = 11 : i64} {
  func.func @vcnet_kernel(%arg0: i32, %arg1: memref<1x128xf32, #tpu.memory_space<vmem>>, %arg2: memref<6x128xf32, #tpu.memory_space<vmem>>, %arg3: memref<32x6xf32, #tpu.memory_space<vmem>>, %arg4: memref<32x1xf32, #tpu.memory_space<vmem>>, %arg5: memref<32x32xf32, #tpu.memory_space<vmem>>, %arg6: memref<32x1xf32, #tpu.memory_space<vmem>>, %arg7: memref<11x32xf32, #tpu.memory_space<vmem>>, %arg8: memref<11x1xf32, #tpu.memory_space<vmem>>, %arg9: memref<160x32xf32, #tpu.memory_space<vmem>>, %arg10: memref<160x1xf32, #tpu.memory_space<vmem>>, %arg11: memref<5x32xf32, #tpu.memory_space<vmem>>, %arg12: memref<5x1xf32, #tpu.memory_space<vmem>>, %arg13: memref<2x128xf32, #tpu.memory_space<vmem>>) attributes {dimension_semantics = [#tpu.dimension_semantics<parallel>], iteration_bounds = array<i64: 1>, scalar_prefetch = 0 : i64, scratch_operands = 0 : i64, tpu.core_type = #tpu.core_type<tc>, window_params = [{transform_indices = @transform_0, window_bounds = array<i64: 1, 128>}, {transform_indices = @transform_1, window_bounds = array<i64: 6, 128>}, {pipeline_mode = #tpu.pipeline_mode<synchronous>, transform_indices = @transform_2, window_bounds = array<i64: 32, 6>}, {pipeline_mode = #tpu.pipeline_mode<synchronous>, transform_indices = @transform_3, window_bounds = array<i64: 32, 1>}, {pipeline_mode = #tpu.pipeline_mode<synchronous>, transform_indices = @transform_4, window_bounds = array<i64: 32, 32>}, {pipeline_mode = #tpu.pipeline_mode<synchronous>, transform_indices = @transform_5, window_bounds = array<i64: 32, 1>}, {pipeline_mode = #tpu.pipeline_mode<synchronous>, transform_indices = @transform_6, window_bounds = array<i64: 11, 32>}, {pipeline_mode = #tpu.pipeline_mode<synchronous>, transform_indices = @transform_7, window_bounds = array<i64: 11, 1>}, {pipeline_mode = #tpu.pipeline_mode<synchronous>, transform_indices = @transform_8, window_bounds = array<i64: 160, 32>}, {pipeline_mode = #tpu.pipeline_mode<synchronous>, transform_indices = @transform_9, window_bounds = array<i64: 160, 1>}, {pipeline_mode = #tpu.pipeline_mode<synchronous>, transform_indices = @transform_10, window_bounds = array<i64: 5, 32>}, {pipeline_mode = #tpu.pipeline_mode<synchronous>, transform_indices = @transform_11, window_bounds = array<i64: 5, 1>}, {transform_indices = @transform_12, window_bounds = array<i64: 2, 128>}]} {
    %c0 = arith.constant 0 : index
    %c0_0 = arith.constant 0 : index
    %0 = vector.load %arg1[%c0, %c0_0] : memref<1x128xf32, #tpu.memory_space<vmem>>, vector<1x128xf32>
    %c0_1 = arith.constant 0 : index
    %c0_2 = arith.constant 0 : index
    %1 = vector.load %arg2[%c0_1, %c0_2] : memref<6x128xf32, #tpu.memory_space<vmem>>, vector<6x128xf32>
    %c0_3 = arith.constant 0 : index
    %c0_4 = arith.constant 0 : index
    %2 = vector.load %arg3[%c0_3, %c0_4] : memref<32x6xf32, #tpu.memory_space<vmem>>, vector<32x6xf32>
    %cst = arith.constant dense<0.000000e+00> : vector<32x128xf32>
    %3 = tpu.matmul %2, %1, %cst {dimension_numbers = #tpu.dot_dimension_numbers<[1], [0], [0], [1], [0, 0, 1, 1], [], []>} : vector<32x6xf32>, vector<6x128xf32>, vector<32x128xf32> -> vector<32x128xf32>
    %c0_5 = arith.constant 0 : index
    %c0_6 = arith.constant 0 : index
    %4 = vector.load %arg4[%c0_5, %c0_6] : memref<32x1xf32, #tpu.memory_space<vmem>>, vector<32x1xf32>
    %5 = vector.broadcast %4 : vector<32x1xf32> to vector<32x128xf32>
    %6 = arith.addf %3, %5 : vector<32x128xf32>
    %cst_7 = arith.constant 0.000000e+00 : f32
    %7 = vector.broadcast %cst_7 : f32 to vector<32x128xf32>
    %8 = arith.maximumf %6, %7 : vector<32x128xf32>
    %c0_8 = arith.constant 0 : index
    %c0_9 = arith.constant 0 : index
    %9 = vector.load %arg5[%c0_8, %c0_9] : memref<32x32xf32, #tpu.memory_space<vmem>>, vector<32x32xf32>
    %cst_10 = arith.constant dense<0.000000e+00> : vector<32x128xf32>
    %10 = tpu.matmul %9, %8, %cst_10 {dimension_numbers = #tpu.dot_dimension_numbers<[1], [0], [0], [1], [0, 0, 1, 1], [], []>} : vector<32x32xf32>, vector<32x128xf32>, vector<32x128xf32> -> vector<32x128xf32>
    %c0_11 = arith.constant 0 : index
    %c0_12 = arith.constant 0 : index
    %11 = vector.load %arg6[%c0_11, %c0_12] : memref<32x1xf32, #tpu.memory_space<vmem>>, vector<32x1xf32>
    %12 = vector.broadcast %11 : vector<32x1xf32> to vector<32x128xf32>
    %13 = arith.addf %10, %12 : vector<32x128xf32>
    %cst_13 = arith.constant 0.000000e+00 : f32
    %14 = vector.broadcast %cst_13 : f32 to vector<32x128xf32>
    %15 = arith.maximumf %13, %14 : vector<32x128xf32>
    %c0_14 = arith.constant 0 : index
    %c0_15 = arith.constant 0 : index
    %16 = vector.load %arg7[%c0_14, %c0_15] : memref<11x32xf32, #tpu.memory_space<vmem>>, vector<11x32xf32>
    %cst_16 = arith.constant dense<0.000000e+00> : vector<11x128xf32>
    %17 = tpu.matmul %16, %15, %cst_16 {dimension_numbers = #tpu.dot_dimension_numbers<[1], [0], [0], [1], [0, 0, 1, 1], [], []>} : vector<11x32xf32>, vector<32x128xf32>, vector<11x128xf32> -> vector<11x128xf32>
    %c0_17 = arith.constant 0 : index
    %c0_18 = arith.constant 0 : index
    %18 = vector.load %arg8[%c0_17, %c0_18] : memref<11x1xf32, #tpu.memory_space<vmem>>, vector<11x1xf32>
    %19 = vector.broadcast %18 : vector<11x1xf32> to vector<11x128xf32>
    %20 = arith.addf %17, %19 : vector<11x128xf32>
    %cst_19 = arith.constant dense<0xFF800000> : vector<128xf32>
    %21 = vector.multi_reduction <maximumf>, %20, %cst_19 [0] : vector<11x128xf32> to vector<128xf32>
    %22 = vector.shape_cast %21 : vector<128xf32> to vector<1x128xf32>
    %23 = vector.broadcast %22 : vector<1x128xf32> to vector<11x128xf32>
    %24 = arith.subf %20, %23 : vector<11x128xf32>
    %25 = math.exp %24 : vector<11x128xf32>
    %cst_20 = arith.constant dense<0.000000e+00> : vector<128xf32>
    %26 = vector.multi_reduction <add>, %25, %cst_20 [0] : vector<11x128xf32> to vector<128xf32>
    %27 = vector.shape_cast %26 : vector<128xf32> to vector<1x128xf32>
    %28 = vector.broadcast %27 : vector<1x128xf32> to vector<11x128xf32>
    %29 = arith.divf %25, %28 : vector<11x128xf32>
    %cst_21 = arith.constant 1.000000e+01 : f32
    %30 = vector.broadcast %cst_21 : f32 to vector<1x128xf32>
    %31 = arith.mulf %0, %30 : vector<1x128xf32>
    %32 = math.ceil %31 : vector<1x128xf32>
    %33 = arith.subf %32, %31 : vector<1x128xf32>
    %cst_22 = arith.constant 1.000000e+00 : f32
    %34 = vector.broadcast %cst_22 : f32 to vector<1x128xf32>
    %35 = arith.subf %34, %33 : vector<1x128xf32>
    %cst_23 = arith.constant 1.000000e+00 : f32
    %36 = vector.broadcast %cst_23 : f32 to vector<1x128xf32>
    %37 = arith.subf %32, %36 : vector<1x128xf32>
    %cst_24 = arith.constant 0.000000e+00 : f32
    %38 = vector.broadcast %cst_24 : f32 to vector<1x128xf32>
    %39 = arith.cmpf olt, %37, %38 : vector<1x128xf32>
    %cst_25 = arith.constant 1.000000e+00 : f32
    %40 = vector.broadcast %cst_25 : f32 to vector<1x128xf32>
    %41 = arith.addf %37, %40 : vector<1x128xf32>
    %42 = arith.select %39, %41, %37 : vector<1x128xi1>, vector<1x128xf32>
    %cst_26 = arith.constant 0.000000e+00 : f32
    %cst_27 = arith.constant 1.000000e+01 : f32
    %43 = vector.broadcast %cst_26 : f32 to vector<1x128xf32>
    %44 = arith.maximumf %43, %42 : vector<1x128xf32>
    %45 = vector.broadcast %cst_27 : f32 to vector<1x128xf32>
    %46 = arith.minimumf %45, %44 : vector<1x128xf32>
    %47 = arith.fptosi %46 : vector<1x128xf32> to vector<1x128xi32>
    %cst_28 = arith.constant 0.000000e+00 : f32
    %cst_29 = arith.constant 1.000000e+01 : f32
    %48 = vector.broadcast %cst_28 : f32 to vector<1x128xf32>
    %49 = arith.maximumf %48, %32 : vector<1x128xf32>
    %50 = vector.broadcast %cst_29 : f32 to vector<1x128xf32>
    %51 = arith.minimumf %50, %49 : vector<1x128xf32>
    %52 = arith.fptosi %51 : vector<1x128xf32> to vector<1x128xi32>
    %53 = tpu.iota {dimensions = array<i32: 0>} : vector<11x128xi32>
    %54 = vector.broadcast %47 : vector<1x128xi32> to vector<11x128xi32>
    %55 = arith.cmpi eq, %53, %54 : vector<11x128xi32>
    %cst_30 = arith.constant 0.000000e+00 : f32
    %56 = vector.broadcast %cst_30 : f32 to vector<11x128xf32>
    %57 = arith.select %55, %29, %56 : vector<11x128xi1>, vector<11x128xf32>
    %cst_31 = arith.constant dense<0.000000e+00> : vector<128xf32>
    %58 = vector.multi_reduction <add>, %57, %cst_31 [0] : vector<11x128xf32> to vector<128xf32>
    %59 = vector.shape_cast %58 : vector<128xf32> to vector<1x128xf32>
    %60 = vector.broadcast %52 : vector<1x128xi32> to vector<11x128xi32>
    %61 = arith.cmpi eq, %53, %60 : vector<11x128xi32>
    %cst_32 = arith.constant 0.000000e+00 : f32
    %62 = vector.broadcast %cst_32 : f32 to vector<11x128xf32>
    %63 = arith.select %61, %29, %62 : vector<11x128xi1>, vector<11x128xf32>
    %cst_33 = arith.constant dense<0.000000e+00> : vector<128xf32>
    %64 = vector.multi_reduction <add>, %63, %cst_33 [0] : vector<11x128xf32> to vector<128xf32>
    %65 = vector.shape_cast %64 : vector<128xf32> to vector<1x128xf32>
    %66 = arith.subf %65, %59 : vector<1x128xf32>
    %67 = arith.mulf %66, %35 : vector<1x128xf32>
    %68 = arith.addf %59, %67 : vector<1x128xf32>
    %cst_34 = arith.constant 1.000000e+00 : f32
    %69 = vector.broadcast %cst_34 : f32 to vector<1x128xf32>
    %70 = arith.mulf %0, %0 : vector<1x128xf32>
    %cst_35 = arith.constant 3.300000e-01 : f32
    %71 = vector.broadcast %cst_35 : f32 to vector<1x128xf32>
    %72 = arith.subf %0, %71 : vector<1x128xf32>
    %cst_36 = arith.constant 0.000000e+00 : f32
    %73 = vector.broadcast %cst_36 : f32 to vector<1x128xf32>
    %74 = arith.maximumf %72, %73 : vector<1x128xf32>
    %75 = arith.mulf %74, %74 : vector<1x128xf32>
    %cst_37 = arith.constant 6.600000e-01 : f32
    %76 = vector.broadcast %cst_37 : f32 to vector<1x128xf32>
    %77 = arith.subf %0, %76 : vector<1x128xf32>
    %cst_38 = arith.constant 0.000000e+00 : f32
    %78 = vector.broadcast %cst_38 : f32 to vector<1x128xf32>
    %79 = arith.maximumf %77, %78 : vector<1x128xf32>
    %80 = arith.mulf %79, %79 : vector<1x128xf32>
    %c0_39 = arith.constant 0 : index
    %c0_40 = arith.constant 0 : index
    %81 = vector.load %arg9[%c0_39, %c0_40] : memref<160x32xf32, #tpu.memory_space<vmem>>, vector<160x32xf32>
    %cst_41 = arith.constant dense<0.000000e+00> : vector<160x128xf32>
    %82 = tpu.matmul %81, %15, %cst_41 {dimension_numbers = #tpu.dot_dimension_numbers<[1], [0], [0], [1], [0, 0, 1, 1], [], []>} : vector<160x32xf32>, vector<32x128xf32>, vector<160x128xf32> -> vector<160x128xf32>
    %c0_42 = arith.constant 0 : index
    %c0_43 = arith.constant 0 : index
    %83 = vector.load %arg10[%c0_42, %c0_43] : memref<160x1xf32, #tpu.memory_space<vmem>>, vector<160x1xf32>
    %84 = vector.broadcast %83 : vector<160x1xf32> to vector<160x128xf32>
    %85 = arith.addf %82, %84 : vector<160x128xf32>
    %cst_44 = arith.constant 0.000000e+00 : f32
    %86 = vector.broadcast %cst_44 : f32 to vector<32x128xf32>
    %87 = vector.extract_strided_slice %85 {offsets = [0, 0], sizes = [32, 128], strides = [1, 1]} : vector<160x128xf32> to vector<32x128xf32>
    %88 = vector.broadcast %69 : vector<1x128xf32> to vector<32x128xf32>
    %89 = arith.mulf %87, %88 : vector<32x128xf32>
    %90 = arith.addf %86, %89 : vector<32x128xf32>
    %91 = vector.extract_strided_slice %85 {offsets = [32, 0], sizes = [32, 128], strides = [1, 1]} : vector<160x128xf32> to vector<32x128xf32>
    %92 = vector.broadcast %0 : vector<1x128xf32> to vector<32x128xf32>
    %93 = arith.mulf %91, %92 : vector<32x128xf32>
    %94 = arith.addf %90, %93 : vector<32x128xf32>
    %95 = vector.extract_strided_slice %85 {offsets = [64, 0], sizes = [32, 128], strides = [1, 1]} : vector<160x128xf32> to vector<32x128xf32>
    %96 = vector.broadcast %70 : vector<1x128xf32> to vector<32x128xf32>
    %97 = arith.mulf %95, %96 : vector<32x128xf32>
    %98 = arith.addf %94, %97 : vector<32x128xf32>
    %99 = vector.extract_strided_slice %85 {offsets = [96, 0], sizes = [32, 128], strides = [1, 1]} : vector<160x128xf32> to vector<32x128xf32>
    %100 = vector.broadcast %75 : vector<1x128xf32> to vector<32x128xf32>
    %101 = arith.mulf %99, %100 : vector<32x128xf32>
    %102 = arith.addf %98, %101 : vector<32x128xf32>
    %103 = vector.extract_strided_slice %85 {offsets = [128, 0], sizes = [32, 128], strides = [1, 1]} : vector<160x128xf32> to vector<32x128xf32>
    %104 = vector.broadcast %80 : vector<1x128xf32> to vector<32x128xf32>
    %105 = arith.mulf %103, %104 : vector<32x128xf32>
    %106 = arith.addf %102, %105 : vector<32x128xf32>
    %cst_45 = arith.constant 0.000000e+00 : f32
    %107 = vector.broadcast %cst_45 : f32 to vector<32x128xf32>
    %108 = arith.maximumf %106, %107 : vector<32x128xf32>
    %c0_46 = arith.constant 0 : index
    %c0_47 = arith.constant 0 : index
    %109 = vector.load %arg11[%c0_46, %c0_47] : memref<5x32xf32, #tpu.memory_space<vmem>>, vector<5x32xf32>
    %cst_48 = arith.constant dense<0.000000e+00> : vector<5x128xf32>
    %110 = tpu.matmul %109, %108, %cst_48 {dimension_numbers = #tpu.dot_dimension_numbers<[1], [0], [0], [1], [0, 0, 1, 1], [], []>} : vector<5x32xf32>, vector<32x128xf32>, vector<5x128xf32> -> vector<5x128xf32>
    %c0_49 = arith.constant 0 : index
    %c0_50 = arith.constant 0 : index
    %111 = vector.load %arg12[%c0_49, %c0_50] : memref<5x1xf32, #tpu.memory_space<vmem>>, vector<5x1xf32>
    %112 = vector.broadcast %111 : vector<5x1xf32> to vector<5x128xf32>
    %113 = arith.addf %110, %112 : vector<5x128xf32>
    %114 = tpu.concatenate %69, %0, %70, %75, %80 in 0 : vector<1x128xf32>, vector<1x128xf32>, vector<1x128xf32>, vector<1x128xf32>, vector<1x128xf32> -> vector<5x128xf32>
    %115 = arith.mulf %113, %114 : vector<5x128xf32>
    %cst_51 = arith.constant dense<0.000000e+00> : vector<128xf32>
    %116 = vector.multi_reduction <add>, %115, %cst_51 [0] : vector<5x128xf32> to vector<128xf32>
    %117 = vector.shape_cast %116 : vector<128xf32> to vector<1x128xf32>
    %118 = tpu.concatenate %68, %117 in 0 : vector<1x128xf32>, vector<1x128xf32> -> vector<2x128xf32>
    %c0_52 = arith.constant 0 : index
    %c0_53 = arith.constant 0 : index
    %119 = vector.load %arg13[%c0_52, %c0_53] : memref<2x128xf32, #tpu.memory_space<vmem>>, vector<2x128xf32>
    tpu.vector_store %arg13[%c0_52, %c0_53], %118 {strides = array<i32>} : memref<2x128xf32, #tpu.memory_space<vmem>>, vector<2x128xf32>,
    return
  }
  func.func @transform_0(%arg0: i32) -> (i32, i32) {
    %c0_i32 = arith.constant 0 : i32
    %c0_i32_0 = arith.constant 0 : i32
    return %c0_i32, %arg0 : i32, i32
  }
  func.func @transform_1(%arg0: i32) -> (i32, i32) {
    %c0_i32 = arith.constant 0 : i32
    %c0_i32_0 = arith.constant 0 : i32
    return %c0_i32, %arg0 : i32, i32
  }
  func.func @transform_2(%arg0: i32) -> (i32, i32) {
    %c0_i32 = arith.constant 0 : i32
    %c0_i32_0 = arith.constant 0 : i32
    %c0_i32_1 = arith.constant 0 : i32
    return %c0_i32, %c0_i32_0 : i32, i32
  }
  func.func @transform_3(%arg0: i32) -> (i32, i32) {
    %c0_i32 = arith.constant 0 : i32
    %c0_i32_0 = arith.constant 0 : i32
    %c0_i32_1 = arith.constant 0 : i32
    return %c0_i32, %c0_i32_0 : i32, i32
  }
  func.func @transform_4(%arg0: i32) -> (i32, i32) {
    %c0_i32 = arith.constant 0 : i32
    %c0_i32_0 = arith.constant 0 : i32
    %c0_i32_1 = arith.constant 0 : i32
    return %c0_i32, %c0_i32_0 : i32, i32
  }
  func.func @transform_5(%arg0: i32) -> (i32, i32) {
    %c0_i32 = arith.constant 0 : i32
    %c0_i32_0 = arith.constant 0 : i32
    %c0_i32_1 = arith.constant 0 : i32
    return %c0_i32, %c0_i32_0 : i32, i32
  }
  func.func @transform_6(%arg0: i32) -> (i32, i32) {
    %c0_i32 = arith.constant 0 : i32
    %c0_i32_0 = arith.constant 0 : i32
    %c0_i32_1 = arith.constant 0 : i32
    return %c0_i32, %c0_i32_0 : i32, i32
  }
  func.func @transform_7(%arg0: i32) -> (i32, i32) {
    %c0_i32 = arith.constant 0 : i32
    %c0_i32_0 = arith.constant 0 : i32
    %c0_i32_1 = arith.constant 0 : i32
    return %c0_i32, %c0_i32_0 : i32, i32
  }
  func.func @transform_8(%arg0: i32) -> (i32, i32) {
    %c0_i32 = arith.constant 0 : i32
    %c0_i32_0 = arith.constant 0 : i32
    %c0_i32_1 = arith.constant 0 : i32
    return %c0_i32, %c0_i32_0 : i32, i32
  }
  func.func @transform_9(%arg0: i32) -> (i32, i32) {
    %c0_i32 = arith.constant 0 : i32
    %c0_i32_0 = arith.constant 0 : i32
    %c0_i32_1 = arith.constant 0 : i32
    return %c0_i32, %c0_i32_0 : i32, i32
  }
  func.func @transform_10(%arg0: i32) -> (i32, i32) {
    %c0_i32 = arith.constant 0 : i32
    %c0_i32_0 = arith.constant 0 : i32
    %c0_i32_1 = arith.constant 0 : i32
    return %c0_i32, %c0_i32_0 : i32, i32
  }
  func.func @transform_11(%arg0: i32) -> (i32, i32) {
    %c0_i32 = arith.constant 0 : i32
    %c0_i32_0 = arith.constant 0 : i32
    %c0_i32_1 = arith.constant 0 : i32
    return %c0_i32, %c0_i32_0 : i32, i32
  }
  func.func @transform_12(%arg0: i32) -> (i32, i32) {
    %c0_i32 = arith.constant 0 : i32
    %c0_i32_0 = arith.constant 0 : i32
    return %c0_i32, %arg0 : i32, i32
  }
}

</mosaic_0001>

<llo_original>
// kernel: tpu_custom_call.1
$region0: #{tpu_custom_call.1}
  #allocation0 [shape = 'u32[]', space=smem, size = 0x4, offset = 0x4, fixed_abs, tag = 'smem constant byte address 0x4 - core index']
  #allocation1 [shape = 'u32[144,128]{1,0:T(1,128)}', space=vmem, size = 0x12000, scoped, tag = 'internal scratch']
  %s0 = inlined_call_operand.vmem [shape: f32[1,128], index: 0, kind: input, shape index: {}]
  %s1 = inlined_call_operand.vmem [shape: f32[6,128], index: 1, kind: input, shape index: {}]
  %s2 = inlined_call_operand.vmem [shape: f32[32,6], index: 2, kind: input, shape index: {}]
  %s3 = inlined_call_operand.vmem [shape: f32[32,1], index: 3, kind: input, shape index: {}]
  %s4 = inlined_call_operand.vmem [shape: f32[32,32], index: 4, kind: input, shape index: {}]
  %s5 = inlined_call_operand.vmem [shape: f32[32,1], index: 5, kind: input, shape index: {}]
  %s6 = inlined_call_operand.vmem [shape: f32[11,32], index: 6, kind: input, shape index: {}]
  %s7 = inlined_call_operand.vmem [shape: f32[11,1], index: 7, kind: input, shape index: {}]
  %s8 = inlined_call_operand.vmem [shape: f32[160,32], index: 8, kind: input, shape index: {}]
  %s9 = inlined_call_operand.vmem [shape: f32[160,1], index: 9, kind: input, shape index: {}]
  %s10 = inlined_call_operand.vmem [shape: f32[5,32], index: 10, kind: input, shape index: {}]
  %s11 = inlined_call_operand.vmem [shape: f32[5,1], index: 11, kind: input, shape index: {}]
  %s12 = inlined_call_operand.hbm [shape: f32[2,128], index: 12, kind: output, shape index: {}]
  %s13 = sld [smem:[#allocation0]]
  $region58: #{tpu_custom_call.1} parent=0
    _
  %s15 = ssub.s32 1, %s13
  %s16 = scalar_select 0, %s15, %s13
  $region1: #{tpu_custom_call.1} parent=0
    #allocation2 [shape = 'u8[1024]{0}', space=vmem, size = 0x400, scoped, tag = 'output window, operand 0, single buffered']
    #allocation3 [shape = 's32[1]{0}', space=sflag, size = 0x4, scoped, tag = 'scoped memory for tpu_custom_call.1']
    %17 = vsyncpa [#allocation3], 0
    // Predicated region
    $region2: #{tpu_custom_call.1} parent=1 // pred_check
      _
    $region3: #{tpu_custom_call.1} parent=1 // pred_check_branch
      %19 = sbr.rel (0) target = $region5
    $region4: #{tpu_custom_call.1} parent=1 // pred_region
      _
    $region5: #{tpu_custom_call.1} parent=1 // pred_fallthru
      _
    // Predicated region
    $region6: #{tpu_custom_call.1} parent=1 // pred_check
      _
    $region7: #{tpu_custom_call.1} parent=1 // pred_check_branch
      %21 = sbr.rel (0) target = $region9
    $region8: #{tpu_custom_call.1} parent=1 // pred_region
      _
    $region9: #{tpu_custom_call.1} parent=1 // pred_fallthru
      _
    // Predicated region
    $region10: #{tpu_custom_call.1} parent=1 // pred_check
      _
    $region11: #{tpu_custom_call.1} parent=1 // pred_check_branch
      %23 = sbr.rel (0) target = $region13
    $region12: #{tpu_custom_call.1} parent=1 // pred_region
      _
    $region13: #{tpu_custom_call.1} parent=1 // pred_fallthru
      _
    // Predicated region
    $region14: #{tpu_custom_call.1} parent=1 // pred_check
      _
    $region15: #{tpu_custom_call.1} parent=1 // pred_check_branch
      %25 = sbr.rel (0) target = $region17
    $region16: #{tpu_custom_call.1} parent=1 // pred_region
      _
    $region17: #{tpu_custom_call.1} parent=1 // pred_fallthru
      _
    // Predicated region
    $region18: #{tpu_custom_call.1} parent=1 // pred_check
      _
    $region19: #{tpu_custom_call.1} parent=1 // pred_check_branch
      %27 = sbr.rel (0) target = $region21
    $region20: #{tpu_custom_call.1} parent=1 // pred_region
      _
    $region21: #{tpu_custom_call.1} parent=1 // pred_fallthru
      _
    // Predicated region
    $region22: #{tpu_custom_call.1} parent=1 // pred_check
      _
    $region23: #{tpu_custom_call.1} parent=1 // pred_check_branch
      %29 = sbr.rel (0) target = $region25
    $region24: #{tpu_custom_call.1} parent=1 // pred_region
      _
    $region25: #{tpu_custom_call.1} parent=1 // pred_fallthru
      _
    // Predicated region
    $region26: #{tpu_custom_call.1} parent=1 // pred_check
      _
    $region27: #{tpu_custom_call.1} parent=1 // pred_check_branch
      %31 = sbr.rel (0) target = $region29
    $region28: #{tpu_custom_call.1} parent=1 // pred_region
      _
    $region29: #{tpu_custom_call.1} parent=1 // pred_fallthru
      _
    // Predicated region
    $region30: #{tpu_custom_call.1} parent=1 // pred_check
      _
    $region31: #{tpu_custom_call.1} parent=1 // pred_check_branch
      %33 = sbr.rel (0) target = $region33
    $region32: #{tpu_custom_call.1} parent=1 // pred_region
      _
    $region33: #{tpu_custom_call.1} parent=1 // pred_fallthru
      _
    // Predicated region
    $region34: #{tpu_custom_call.1} parent=1 // pred_check
      _
    $region35: #{tpu_custom_call.1} parent=1 // pred_check_branch
      %35 = sbr.rel (0) target = $region37
    $region36: #{tpu_custom_call.1} parent=1 // pred_region
      _
    $region37: #{tpu_custom_call.1} parent=1 // pred_fallthru
      _
    // Predicated region
    $region38: #{tpu_custom_call.1} parent=1 // pred_check
      _
    $region39: #{tpu_custom_call.1} parent=1 // pred_check_branch
      %37 = sbr.rel (0) target = $region41
    $region40: #{tpu_custom_call.1} parent=1 // pred_region
      _
    $region41: #{tpu_custom_call.1} parent=1 // pred_fallthru
      _
    // Predicated region
    $region42: #{tpu_custom_call.1} parent=1 // pred_check
      _
    $region43: #{tpu_custom_call.1} parent=1 // pred_check_branch
      %39 = sbr.rel (0) target = $region45
    $region44: #{tpu_custom_call.1} parent=1 // pred_region
      _
    $region45: #{tpu_custom_call.1} parent=1 // pred_fallthru
      _
    // Predicated region
    $region46: #{tpu_custom_call.1} parent=1 // pred_check
      _
    $region47: #{tpu_custom_call.1} parent=1 // pred_check_branch
      %41 = sbr.rel (0) target = $region49
    $region48: #{tpu_custom_call.1} parent=1 // pred_region
      _
    $region49: #{tpu_custom_call.1} parent=1 // pred_fallthru
      _
    %v42 = vld [vmem:[%s0] sm:$0x1]
    %v43 = vld [vmem:[%s1] sm:$0x3f]
    %v44 = vld [vmem:[%s2] sm:$0xff]
    %v45 = vld [vmem:[%s2 + $0x8] sm:$0xff]
    %v46 = vld [vmem:[%s2 + $0x10] sm:$0xff]
    %v47 = vld [vmem:[%s2 + $0x18] sm:$0xff]
    %v48 = vld [vmem:[%s3] sm:$0xff]
    %v49 = vld [vmem:[%s3 + $0x8] sm:$0xff]
    %v50 = vld [vmem:[%s3 + $0x10] sm:$0xff]
    %v51 = vld [vmem:[%s3 + $0x18] sm:$0xff]
    %53 = vset.pattern.permute.xlu0 0
    %54 = vperm.xlu0 %53, %v48
    %v55 = vpop.permute.xlu0 %54
    %58 = vset.pattern.permute.xlu0 0
    %59 = vperm.xlu0 %58, %v49
    %v60 = vpop.permute.xlu0 %59
    %63 = vset.pattern.permute.xlu0 0
    %64 = vperm.xlu0 %63, %v50
    %v65 = vpop.permute.xlu0 %64
    %68 = vset.pattern.permute.xlu0 0
    %69 = vperm.xlu0 %68, %v51
    %v70 = vpop.permute.xlu0 %69
    %vm72 = vcmask 48128
    %v74 = vsel %vm72, %v44, 0
    %v77 = vsel %vm72, %v45, 0
    %v80 = vsel %vm72, %v46, 0
    %v83 = vsel %vm72, %v47, 0
    %vm85 = vcmask 1045504
    %v87 = vsel %vm85, %v43, 0
    %89 = vmatprep.subr.mxu0 0.0
    %90 = vmatpush1.msra.mxu0 0.0
    %91 = vmatprep.subr.mxu0 0.0
    %92 = vmatpush1.msra.mxu0 0.0
    %93 = vmatprep.subr.mxu0 0.0
    %94 = vmatpush1.msra.mxu0 0.0
    %95 = vmatprep.subr.mxu0 0.0
    %96 = vmatpush1.msra.mxu0 0.0
    %97 = vmatprep.subr.mxu0 0.0
    %98 = vmatpush1.msra.mxu0 0.0
    %99 = vmatprep.subr.mxu0 0.0
    %100 = vmatpush1.msra.mxu0 0.0
    %101 = vmatprep.subr.mxu0 0.0
    %102 = vmatpush1.msra.mxu0 0.0
    %103 = vmatprep.subr.mxu0 0.0
    %104 = vmatpush1.msra.mxu0 0.0
    %105 = vmatprep.subr.mxu0 0.0
    %106 = vmatpush1.msra.mxu0 0.0
    %107 = vmatprep.subr.mxu0 0.0
    %108 = vmatpush1.msra.mxu0 0.0
    %109 = vmatprep.subr.mxu0 0.0
    %110 = vmatpush1.msra.mxu0 0.0
    %111 = vmatprep.subr.mxu0 0.0
    %112 = vmatpush1.msra.mxu0 0.0
    %113 = vmatprep.subr.mxu0 0.0
    %114 = vmatpush1.msra.mxu0 0.0
    %115 = vmatprep.subr.mxu0 0.0
    %116 = vmatpush1.msra.mxu0 0.0
    %117 = vmatprep.subr.mxu0 0.0
    %118 = vmatpush1.msra.mxu0 0.0
    %119 = vmatprep.subr.mxu0 0.0
    %120 = vmatpush1.msra.mxu0 %v87
    %121 = vmatprep.subr.mxu0 0.0
    %122 = vmatpush2.msra.mxu0 0.0
    %123 = vmatprep.subr.mxu0 0.0
    %124 = vmatpush2.msra.mxu0 0.0
    %125 = vmatprep.subr.mxu0 0.0
    %126 = vmatpush2.msra.mxu0 0.0
    %127 = vmatprep.subr.mxu0 0.0
    %128 = vmatpush2.msra.mxu0 0.0
    %129 = vmatprep.subr.mxu0 0.0
    %130 = vmatpush2.msra.mxu0 0.0
    %131 = vmatprep.subr.mxu0 0.0
    %132 = vmatpush2.msra.mxu0 0.0
    %133 = vmatprep.subr.mxu0 0.0
    %134 = vmatpush2.msra.mxu0 0.0
    %135 = vmatprep.subr.mxu0 0.0
    %136 = vmatpush2.msra.mxu0 0.0
    %137 = vmatprep.subr.mxu0 0.0
    %138 = vmatpush2.msra.mxu0 0.0
    %139 = vmatprep.subr.mxu0 0.0
    %140 = vmatpush2.msra.mxu0 0.0
    %141 = vmatprep.subr.mxu0 0.0
    %142 = vmatpush2.msra.mxu0 0.0
    %143 = vmatprep.subr.mxu0 0.0
    %144 = vmatpush2.msra.mxu0 0.0
    %145 = vmatprep.subr.mxu0 0.0
    %146 = vmatpush2.msra.mxu0 0.0
    %147 = vmatprep.subr.mxu0 0.0
    %148 = vmatpush2.msra.mxu0 0.0
    %149 = vmatprep.subr.mxu0 0.0
    %150 = vmatpush2.msra.mxu0 0.0
    %151 = vmatprep.subr.mxu0 0.0
    %152 = vmatpush2.msra.mxu0 0.0
    %153 = vmatprep.mubr.f32.mxu0 0.0
    %154 = vmatmul.mubr.f32.gmra.mxu0 %v74
    %v155 = vpop.f32.mrf.mxu0
    %v156 = vadd.f32 %v55, %v155
    %v157 = vpop.f32.mrf.mxu0
    %158 = vmatprep.mubr.f32.mxu0 0.0
    %159 = vmatmul.mubr.f32.gmra.mxu0 %v77
    %v160 = vpop.f32.mrf.mxu0
    %v161 = vadd.f32 %v60, %v160
    %v162 = vpop.f32.mrf.mxu0
    %163 = vmatprep.mubr.f32.mxu0 0.0
    %164 = vmatmul.mubr.f32.gmra.mxu0 %v80
    %v165 = vpop.f32.mrf.mxu0
    %v166 = vadd.f32 %v65, %v165
    %v167 = vpop.f32.mrf.mxu0
    %168 = vmatprep.mubr.f32.mxu0 0.0
    %169 = vmatmul.mubr.f32.gmra.mxu0 %v83
    %v170 = vpop.f32.mrf.mxu0
    %v171 = vadd.f32 %v70, %v170
    %v172 = vpop.f32.mrf.mxu0
    %173 = vdwg.mxu0
    %v174 = vmax.f32 %v156, 0.0
    %v175 = vmax.f32 %v161, 0.0
    %v176 = vmax.f32 %v166, 0.0
    %v177 = vmax.f32 %v171, 0.0
    %v178 = vld [vmem:[%s4] sm:$0xff]
    %v179 = vld [vmem:[%s4 + $0x8] sm:$0xff]
    %v180 = vld [vmem:[%s4 + $0x10] sm:$0xff]
    %v181 = vld [vmem:[%s4 + $0x18] sm:$0xff]
    %v182 = vld [vmem:[%s5] sm:$0xff]
    %v183 = vld [vmem:[%s5 + $0x8] sm:$0xff]
    %v184 = vld [vmem:[%s5 + $0x10] sm:$0xff]
    %v185 = vld [vmem:[%s5 + $0x18] sm:$0xff]
    %187 = vset.pattern.permute.xlu0 0
    %188 = vperm.xlu0 %187, %v182
    %v189 = vpop.permute.xlu0 %188
    %192 = vset.pattern.permute.xlu0 0
    %193 = vperm.xlu0 %192, %v183
    %v194 = vpop.permute.xlu0 %193
    %197 = vset.pattern.permute.xlu0 0
    %198 = vperm.xlu0 %197, %v184
    %v199 = vpop.permute.xlu0 %198
    %202 = vset.pattern.permute.xlu0 0
    %203 = vperm.xlu0 %202, %v185
    %v204 = vpop.permute.xlu0 %203
    %vm206 = vcmask 261120
    %v208 = vsel %vm206, %v178, 0
    %v211 = vsel %vm206, %v179, 0
    %v214 = vsel %vm206, %v180, 0
    %v217 = vsel %vm206, %v181, 0
    %219 = vmatprep.subr.mxu0 0.0
    %220 = vmatpush1.msra.mxu0 0.0
    %221 = vmatprep.subr.mxu0 0.0
    %222 = vmatpush1.msra.mxu0 0.0
    %223 = vmatprep.subr.mxu0 0.0
    %224 = vmatpush1.msra.mxu0 0.0
    %225 = vmatprep.subr.mxu0 0.0
    %226 = vmatpush1.msra.mxu0 0.0
    %227 = vmatprep.subr.mxu0 0.0
    %228 = vmatpush1.msra.mxu0 0.0
    %229 = vmatprep.subr.mxu0 0.0
    %230 = vmatpush1.msra.mxu0 0.0
    %231 = vmatprep.subr.mxu0 0.0
    %232 = vmatpush1.msra.mxu0 0.0
    %233 = vmatprep.subr.mxu0 0.0
    %234 = vmatpush1.msra.mxu0 0.0
    %235 = vmatprep.subr.mxu0 0.0
    %236 = vmatpush1.msra.mxu0 0.0
    %237 = vmatprep.subr.mxu0 0.0
    %238 = vmatpush1.msra.mxu0 0.0
    %239 = vmatprep.subr.mxu0 0.0
    %240 = vmatpush1.msra.mxu0 0.0
    %241 = vmatprep.subr.mxu0 0.0
    %242 = vmatpush1.msra.mxu0 0.0
    %243 = vmatprep.subr.mxu0 0.0
    %244 = vmatpush1.msra.mxu0 %v177
    %245 = vmatprep.subr.mxu0 0.0
    %246 = vmatpush1.msra.mxu0 %v176
    %247 = vmatprep.subr.mxu0 0.0
    %248 = vmatpush1.msra.mxu0 %v175
    %249 = vmatprep.subr.mxu0 0.0
    %250 = vmatpush1.msra.mxu0 %v174
    %251 = vmatprep.subr.mxu0 0.0
    %252 = vmatpush2.msra.mxu0 0.0
    %253 = vmatprep.subr.mxu0 0.0
    %254 = vmatpush2.msra.mxu0 0.0
    %255 = vmatprep.subr.mxu0 0.0
    %256 = vmatpush2.msra.mxu0 0.0
    %257 = vmatprep.subr.mxu0 0.0
    %258 = vmatpush2.msra.mxu0 0.0
    %259 = vmatprep.subr.mxu0 0.0
    %260 = vmatpush2.msra.mxu0 0.0
    %261 = vmatprep.subr.mxu0 0.0
    %262 = vmatpush2.msra.mxu0 0.0
    %263 = vmatprep.subr.mxu0 0.0
    %264 = vmatpush2.msra.mxu0 0.0
    %265 = vmatprep.subr.mxu0 0.0
    %266 = vmatpush2.msra.mxu0 0.0
    %267 = vmatprep.subr.mxu0 0.0
    %268 = vmatpush2.msra.mxu0 0.0
    %269 = vmatprep.subr.mxu0 0.0
    %270 = vmatpush2.msra.mxu0 0.0
    %271 = vmatprep.subr.mxu0 0.0
    %272 = vmatpush2.msra.mxu0 0.0
    %273 = vmatprep.subr.mxu0 0.0
    %274 = vmatpush2.msra.mxu0 0.0
    %275 = vmatprep.subr.mxu0 0.0
    %276 = vmatpush2.msra.mxu0 0.0
    %277 = vmatprep.subr.mxu0 0.0
    %278 = vmatpush2.msra.mxu0 0.0
    %279 = vmatprep.subr.mxu0 0.0
    %280 = vmatpush2.msra.mxu0 0.0
    %281 = vmatprep.subr.mxu0 0.0
    %282 = vmatpush2.msra.mxu0 0.0
    %283 = vmatprep.mubr.f32.mxu0 0.0
    %284 = vmatmul.mubr.f32.gmra.mxu0 %v208
    %v285 = vpop.f32.mrf.mxu0
    %v286 = vadd.f32 %v189, %v285
    %v287 = vpop.f32.mrf.mxu0
    %288 = vmatprep.mubr.f32.mxu0 0.0
    %289 = vmatmul.mubr.f32.gmra.mxu0 %v211
    %v290 = vpop.f32.mrf.mxu0
    %v291 = vadd.f32 %v194, %v290
    %v292 = vpop.f32.mrf.mxu0
    %293 = vmatprep.mubr.f32.mxu0 0.0
    %294 = vmatmul.mubr.f32.gmra.mxu0 %v214
    %v295 = vpop.f32.mrf.mxu0
    %v296 = vadd.f32 %v199, %v295
    %v297 = vpop.f32.mrf.mxu0
    %298 = vmatprep.mubr.f32.mxu0 0.0
    %299 = vmatmul.mubr.f32.gmra.mxu0 %v217
    %v300 = vpop.f32.mrf.mxu0
    %v301 = vadd.f32 %v204, %v300
    %v302 = vpop.f32.mrf.mxu0
    %303 = vdwg.mxu0
    %v304 = vmax.f32 %v286, 0.0
    %v305 = vmax.f32 %v291, 0.0
    %v306 = vmax.f32 %v296, 0.0
    %v307 = vmax.f32 %v301, 0.0
    %v308 = vld [vmem:[%s6] sm:$0xff]
    %v309 = vld [vmem:[%s6 + $0x8] sm:$0x7]
    %v310 = vld [vmem:[%s7] sm:$0xff]
    %v311 = vld [vmem:[%s7 + $0x8] sm:$0x7]
    %313 = vset.pattern.permute.xlu0 0
    %314 = vperm.xlu0 %313, %v310
    %v315 = vpop.permute.xlu0 %314
    %318 = vset.pattern.permute.xlu0 0
    %319 = vperm.xlu0 %318, %v311
    %v320 = vpop.permute.xlu0 %319
    %v323 = vsel %vm206, %v308, 0
    %v326 = vsel %vm206, %v309, 0
    %328 = vmatprep.subr.mxu0 0.0
    %329 = vmatpush1.msra.mxu0 0.0
    %330 = vmatprep.subr.mxu0 0.0
    %331 = vmatpush1.msra.mxu0 0.0
    %332 = vmatprep.subr.mxu0 0.0
    %333 = vmatpush1.msra.mxu0 0.0
    %334 = vmatprep.subr.mxu0 0.0
    %335 = vmatpush1.msra.mxu0 0.0
    %336 = vmatprep.subr.mxu0 0.0
    %337 = vmatpush1.msra.mxu0 0.0
    %338 = vmatprep.subr.mxu0 0.0
    %339 = vmatpush1.msra.mxu0 0.0
    %340 = vmatprep.subr.mxu0 0.0
    %341 = vmatpush1.msra.mxu0 0.0
    %342 = vmatprep.subr.mxu0 0.0
    %343 = vmatpush1.msra.mxu0 0.0
    %344 = vmatprep.subr.mxu0 0.0
    %345 = vmatpush1.msra.mxu0 0.0
    %346 = vmatprep.subr.mxu0 0.0
    %347 = vmatpush1.msra.mxu0 0.0
    %348 = vmatprep.subr.mxu0 0.0
    %349 = vmatpush1.msra.mxu0 0.0
    %350 = vmatprep.subr.mxu0 0.0
    %351 = vmatpush1.msra.mxu0 0.0
    %352 = vmatprep.subr.mxu0 0.0
    %353 = vmatpush1.msra.mxu0 %v307
    %354 = vmatprep.subr.mxu0 0.0
    %355 = vmatpush1.msra.mxu0 %v306
    %356 = vmatprep.subr.mxu0 0.0
    %357 = vmatpush1.msra.mxu0 %v305
    %358 = vmatprep.subr.mxu0 0.0
    %359 = vmatpush1.msra.mxu0 %v304
    %360 = vmatprep.subr.mxu0 0.0
    %361 = vmatpush2.msra.mxu0 0.0
    %362 = vmatprep.subr.mxu0 0.0
    %363 = vmatpush2.msra.mxu0 0.0
    %364 = vmatprep.subr.mxu0 0.0
    %365 = vmatpush2.msra.mxu0 0.0
    %366 = vmatprep.subr.mxu0 0.0
    %367 = vmatpush2.msra.mxu0 0.0
    %368 = vmatprep.subr.mxu0 0.0
    %369 = vmatpush2.msra.mxu0 0.0
    %370 = vmatprep.subr.mxu0 0.0
    %371 = vmatpush2.msra.mxu0 0.0
    %372 = vmatprep.subr.mxu0 0.0
    %373 = vmatpush2.msra.mxu0 0.0
    %374 = vmatprep.subr.mxu0 0.0
    %375 = vmatpush2.msra.mxu0 0.0
    %376 = vmatprep.subr.mxu0 0.0
    %377 = vmatpush2.msra.mxu0 0.0
    %378 = vmatprep.subr.mxu0 0.0
    %379 = vmatpush2.msra.mxu0 0.0
    %380 = vmatprep.subr.mxu0 0.0
    %381 = vmatpush2.msra.mxu0 0.0
    %382 = vmatprep.subr.mxu0 0.0
    %383 = vmatpush2.msra.mxu0 0.0
    %384 = vmatprep.subr.mxu0 0.0
    %385 = vmatpush2.msra.mxu0 0.0
    %386 = vmatprep.subr.mxu0 0.0
    %387 = vmatpush2.msra.mxu0 0.0
    %388 = vmatprep.subr.mxu0 0.0
    %389 = vmatpush2.msra.mxu0 0.0
    %390 = vmatprep.subr.mxu0 0.0
    %391 = vmatpush2.msra.mxu0 0.0
    %392 = vmatprep.mubr.f32.mxu0 0.0
    %393 = vmatmul.mubr.f32.gmra.mxu0 %v323
    %v394 = vpop.f32.mrf.mxu0
    %v395 = vadd.f32 %v315, %v394
    %v396 = vpop.f32.mrf.mxu0
    %397 = vmatprep.mubr.f32.mxu0 0.0
    %398 = vmatmul.mubr.f32.gmra.mxu0 %v326
    %v399 = vpop.f32.mrf.mxu0
    %v400 = vadd.f32 %v320, %v399
    %v401 = vpop.f32.mrf.mxu0
    %402 = vdwg.mxu0
    %vm403 = vcmask 1042432
    %v404 = vsel %vm403, %v400, -inf
    %v405 = vmax.f32 %v395, %v404
    %v406 = vrot.slane %v405, 4
    %v407 = vmax.f32 %v405, %v406
    %v408 = vrot.slane %v407, 2
    %v409 = vmax.f32 %v407, %v408
    %v410 = vrot.slane %v409, 1
    %v411 = vmax.f32 %v409, %v410
    %v412 = vsub.f32 %v395, %v411
    %v413 = vsub.f32 %v400, %v411
    %v414 = vmul.f32 %v412, 1.442695
    %v415 = vpow.pop %v414
    %v416 = vmul.f32 %v413, 1.442695
    %v417 = vpow.pop %v416
    %v418 = vsel %vm403, %v417, 0.0
    %v419 = vadd.f32 %v415, %v418
    %v420 = vrot.slane %v419, 4
    %v421 = vadd.f32 %v419, %v420
    %v422 = vrot.slane %v421, 2
    %v423 = vadd.f32 %v421, %v422
    %v424 = vrot.slane %v423, 1
    %v425 = vadd.f32 %v423, %v424
    %v426 = vrcp.pop %v425
    %v427 = vmul.f32 %v415, %v426
    %v428 = vmul.f32 %v417, %v426
    %v429 = vmul.f32 %v42, 10.0
    %v430 = vceil.f32 %v429
    %v431 = vsub.f32 %v430, %v429
    %v432 = vsub.f32 1.0, %v431
    %v433 = vsub.f32 %v430, 1.0
    %vm434 = vcmp.lt.f32.partialorder %v433, 0.0
    %v435 = vadd.f32 %v433, 1.0
    %v436 = vsel %vm434, %v435, %v433
    %v437 = vmax.f32 %v436, 0.0
    %v438 = vmin.f32 %v437, 10.0
    %v439 = vcvt.f32.s32.to.zero.pseudo %v438
    %v440 = vmax.f32 %v430, 0.0
    %v441 = vmin.f32 %v440, 10.0
    %v442 = vcvt.f32.s32.to.zero.pseudo %v441
    %v443 = vlaneseq
    %v444 = vshrl.u32 %v443, 7
    %v445 = vadd.s32 %v444, 8
    %v446 = vlaneseq
    %v447 = vshrl.u32 %v446, 7
    %v448 = vsub.s32 0, %v447
    %v449 = vrot.slane %v439, %v448
    %vm450 = vcmp.eq.s32.totalorder %v444, %v449
    %vm451 = vcmp.eq.s32.totalorder %v445, %v449
    %v452 = vsel %vm450, %v427, 0.0
    %v453 = vsel %vm451, %v428, 0.0
    %v454 = vsel %vm403, %v453, 0.0
    %v455 = vadd.f32 %v452, %v454
    %v456 = vrot.slane %v455, 4
    %v457 = vadd.f32 %v455, %v456
    %v458 = vrot.slane %v457, 2
    %v459 = vadd.f32 %v457, %v458
    %v460 = vrot.slane %v459, 1
    %v461 = vadd.f32 %v459, %v460
    %v462 = vlaneseq
    %v463 = vshrl.u32 %v462, 7
    %v464 = vsub.s32 0, %v463
    %v465 = vrot.slane %v442, %v464
    %vm466 = vcmp.eq.s32.totalorder %v444, %v465
    %vm467 = vcmp.eq.s32.totalorder %v445, %v465
    %v468 = vsel %vm466, %v427, 0.0
    %v469 = vsel %vm467, %v428, 0.0
    %v470 = vsel %vm403, %v469, 0.0
    %v471 = vadd.f32 %v468, %v470
    %v472 = vrot.slane %v471, 4
    %v473 = vadd.f32 %v471, %v472
    %v474 = vrot.slane %v473, 2
    %v475 = vadd.f32 %v473, %v474
    %v476 = vrot.slane %v475, 1
    %v477 = vadd.f32 %v475, %v476
    %v478 = vsub.f32 %v477, %v461
    %v479 = vmul.f32 %v478, %v432
    %v480 = vadd.f32 %v461, %v479
    %v481 = vmul.f32 %v42, %v42
    %v482 = vsub.f32 %v42, 0.33
    %v483 = vmax.f32 %v482, 0.0
    %v484 = vmul.f32 %v483, %v483
    %v485 = vsub.f32 %v42, 0.66
    %v486 = vmax.f32 %v485, 0.0
    %v487 = vmul.f32 %v486, %v486
    %v488 = vld [vmem:[%s8] sm:$0xff]
    %v489 = vld [vmem:[%s8 + $0x8] sm:$0xff]
    %v490 = vld [vmem:[%s8 + $0x10] sm:$0xff]
    %v491 = vld [vmem:[%s8 + $0x18] sm:$0xff]
    %v492 = vld [vmem:[%s8 + $0x20] sm:$0xff]
    %v493 = vld [vmem:[%s8 + $0x28] sm:$0xff]
    %v494 = vld [vmem:[%s8 + $0x30] sm:$0xff]
    %v495 = vld [vmem:[%s8 + $0x38] sm:$0xff]
    %v496 = vld [vmem:[%s8 + $0x40] sm:$0xff]
    %v497 = vld [vmem:[%s8 + $0x48] sm:$0xff]
    %v498 = vld [vmem:[%s8 + $0x50] sm:$0xff]
    %v499 = vld [vmem:[%s8 + $0x58] sm:$0xff]
    %v500 = vld [vmem:[%s8 + $0x60] sm:$0xff]
    %v501 = vld [vmem:[%s8 + $0x68] sm:$0xff]
    %v502 = vld [vmem:[%s8 + $0x70] sm:$0xff]
    %v503 = vld [vmem:[%s8 + $0x78] sm:$0xff]
    %v504 = vld [vmem:[%s8 + $0x80] sm:$0xff]
    %v505 = vld [vmem:[%s8 + $0x88] sm:$0xff]
    %v506 = vld [vmem:[%s8 + $0x90] sm:$0xff]
    %v507 = vld [vmem:[%s8 + $0x98] sm:$0xff]
    %v508 = vld [vmem:[%s9] sm:$0xff]
    %v509 = vld [vmem:[%s9 + $0x8] sm:$0xff]
    %v510 = vld [vmem:[%s9 + $0x10] sm:$0xff]
    %v511 = vld [vmem:[%s9 + $0x18] sm:$0xff]
    %v512 = vld [vmem:[%s9 + $0x20] sm:$0xff]
    %v513 = vld [vmem:[%s9 + $0x28] sm:$0xff]
    %v514 = vld [vmem:[%s9 + $0x30] sm:$0xff]
    %v515 = vld [vmem:[%s9 + $0x38] sm:$0xff]
    %v516 = vld [vmem:[%s9 + $0x40] sm:$0xff]
    %v517 = vld [vmem:[%s9 + $0x48] sm:$0xff]
    %v518 = vld [vmem:[%s9 + $0x50] sm:$0xff]
    %v519 = vld [vmem:[%s9 + $0x58] sm:$0xff]
    %v520 = vld [vmem:[%s9 + $0x60] sm:$0xff]
    %v521 = vld [vmem:[%s9 + $0x68] sm:$0xff]
    %v522 = vld [vmem:[%s9 + $0x70] sm:$0xff]
    %v523 = vld [vmem:[%s9 + $0x78] sm:$0xff]
    %v524 = vld [vmem:[%s9 + $0x80] sm:$0xff]
    %v525 = vld [vmem:[%s9 + $0x88] sm:$0xff]
    %v526 = vld [vmem:[%s9 + $0x90] sm:$0xff]
    %v527 = vld [vmem:[%s9 + $0x98] sm:$0xff]
    %529 = vset.pattern.permute.xlu0 0
    %530 = vperm.xlu0 %529, %v508
    %v531 = vpop.permute.xlu0 %530
    %534 = vset.pattern.permute.xlu0 0
    %535 = vperm.xlu0 %534, %v509
    %v536 = vpop.permute.xlu0 %535
    %539 = vset.pattern.permute.xlu0 0
    %540 = vperm.xlu0 %539, %v510
    %v541 = vpop.permute.xlu0 %540
    %544 = vset.pattern.permute.xlu0 0
    %545 = vperm.xlu0 %544, %v511
    %v546 = vpop.permute.xlu0 %545
    %549 = vset.pattern.permute.xlu0 0
    %550 = vperm.xlu0 %549, %v512
    %v551 = vpop.permute.xlu0 %550
    %554 = vset.pattern.permute.xlu0 0
    %555 = vperm.xlu0 %554, %v513
    %v556 = vpop.permute.xlu0 %555
    %559 = vset.pattern.permute.xlu0 0
    %560 = vperm.xlu0 %559, %v514
    %v561 = vpop.permute.xlu0 %560
    %564 = vset.pattern.permute.xlu0 0
    %565 = vperm.xlu0 %564, %v515
    %v566 = vpop.permute.xlu0 %565
    %569 = vset.pattern.permute.xlu0 0
    %570 = vperm.xlu0 %569, %v516
    %v571 = vpop.permute.xlu0 %570
    %574 = vset.pattern.permute.xlu0 0
    %575 = vperm.xlu0 %574, %v517
    %v576 = vpop.permute.xlu0 %575
    %579 = vset.pattern.permute.xlu0 0
    %580 = vperm.xlu0 %579, %v518
    %v581 = vpop.permute.xlu0 %580
    %584 = vset.pattern.permute.xlu0 0
    %585 = vperm.xlu0 %584, %v519
    %v586 = vpop.permute.xlu0 %585
    %589 = vset.pattern.permute.xlu0 0
    %590 = vperm.xlu0 %589, %v520
    %v591 = vpop.permute.xlu0 %590
    %594 = vset.pattern.permute.xlu0 0
    %595 = vperm.xlu0 %594, %v521
    %v596 = vpop.permute.xlu0 %595
    %599 = vset.pattern.permute.xlu0 0
    %600 = vperm.xlu0 %599, %v522
    %v601 = vpop.permute.xlu0 %600
    %604 = vset.pattern.permute.xlu0 0
    %605 = vperm.xlu0 %604, %v523
    %v606 = vpop.permute.xlu0 %605
    %609 = vset.pattern.permute.xlu0 0
    %610 = vperm.xlu0 %609, %v524
    %v611 = vpop.permute.xlu0 %610
    %614 = vset.pattern.permute.xlu0 0
    %615 = vperm.xlu0 %614, %v525
    %v616 = vpop.permute.xlu0 %615
    %619 = vset.pattern.permute.xlu0 0
    %620 = vperm.xlu0 %619, %v526
    %v621 = vpop.permute.xlu0 %620
    %624 = vset.pattern.permute.xlu0 0
    %625 = vperm.xlu0 %624, %v527
    %v626 = vpop.permute.xlu0 %625
    %v629 = vsel %vm206, %v488, 0
    %v632 = vsel %vm206, %v489, 0
    %v635 = vsel %vm206, %v490, 0
    %v638 = vsel %vm206, %v491, 0
    %v641 = vsel %vm206, %v492, 0
    %v644 = vsel %vm206, %v493, 0
    %v647 = vsel %vm206, %v494, 0
    %v650 = vsel %vm206, %v495, 0
    %v653 = vsel %vm206, %v496, 0
    %v656 = vsel %vm206, %v497, 0
    %v659 = vsel %vm206, %v498, 0
    %v662 = vsel %vm206, %v499, 0
    %v665 = vsel %vm206, %v500, 0
    %v668 = vsel %vm206, %v501, 0
    %v671 = vsel %vm206, %v502, 0
    %v674 = vsel %vm206, %v503, 0
    %v677 = vsel %vm206, %v504, 0
    %v680 = vsel %vm206, %v505, 0
    %v683 = vsel %vm206, %v506, 0
    %v686 = vsel %vm206, %v507, 0
    %688 = vmatprep.subr.mxu0 0.0
    %689 = vmatpush1.msra.mxu0 0.0
    %690 = vmatprep.subr.mxu0 0.0
    %691 = vmatpush1.msra.mxu0 0.0
    %692 = vmatprep.subr.mxu0 0.0
    %693 = vmatpush1.msra.mxu0 0.0
    %694 = vmatprep.subr.mxu0 0.0
    %695 = vmatpush1.msra.mxu0 0.0
    %696 = vmatprep.subr.mxu0 0.0
    %697 = vmatpush1.msra.mxu0 0.0
    %698 = vmatprep.subr.mxu0 0.0
    %699 = vmatpush1.msra.mxu0 0.0
    %700 = vmatprep.subr.mxu0 0.0
    %701 = vmatpush1.msra.mxu0 0.0
    %702 = vmatprep.subr.mxu0 0.0
    %703 = vmatpush1.msra.mxu0 0.0
    %704 = vmatprep.subr.mxu0 0.0
    %705 = vmatpush1.msra.mxu0 0.0
    %706 = vmatprep.subr.mxu0 0.0
    %707 = vmatpush1.msra.mxu0 0.0
    %708 = vmatprep.subr.mxu0 0.0
    %709 = vmatpush1.msra.mxu0 0.0
    %710 = vmatprep.subr.mxu0 0.0
    %711 = vmatpush1.msra.mxu0 0.0
    %712 = vmatprep.subr.mxu0 0.0
    %713 = vmatpush1.msra.mxu0 %v307
    %714 = vmatprep.subr.mxu0 0.0
    %715 = vmatpush1.msra.mxu0 %v306
    %716 = vmatprep.subr.mxu0 0.0
    %717 = vmatpush1.msra.mxu0 %v305
    %718 = vmatprep.subr.mxu0 0.0
    %719 = vmatpush1.msra.mxu0 %v304
    %720 = vmatprep.subr.mxu0 0.0
    %721 = vmatpush2.msra.mxu0 0.0
    %722 = vmatprep.subr.mxu0 0.0
    %723 = vmatpush2.msra.mxu0 0.0
    %724 = vmatprep.subr.mxu0 0.0
    %725 = vmatpush2.msra.mxu0 0.0
    %726 = vmatprep.subr.mxu0 0.0
    %727 = vmatpush2.msra.mxu0 0.0
    %728 = vmatprep.subr.mxu0 0.0
    %729 = vmatpush2.msra.mxu0 0.0
    %730 = vmatprep.subr.mxu0 0.0
    %731 = vmatpush2.msra.mxu0 0.0
    %732 = vmatprep.subr.mxu0 0.0
    %733 = vmatpush2.msra.mxu0 0.0
    %734 = vmatprep.subr.mxu0 0.0
    %735 = vmatpush2.msra.mxu0 0.0
    %736 = vmatprep.subr.mxu0 0.0
    %737 = vmatpush2.msra.mxu0 0.0
    %738 = vmatprep.subr.mxu0 0.0
    %739 = vmatpush2.msra.mxu0 0.0
    %740 = vmatprep.subr.mxu0 0.0
    %741 = vmatpush2.msra.mxu0 0.0
    %742 = vmatprep.subr.mxu0 0.0
    %743 = vmatpush2.msra.mxu0 0.0
    %744 = vmatprep.subr.mxu0 0.0
    %745 = vmatpush2.msra.mxu0 0.0
    %746 = vmatprep.subr.mxu0 0.0
    %747 = vmatpush2.msra.mxu0 0.0
    %748 = vmatprep.subr.mxu0 0.0
    %749 = vmatpush2.msra.mxu0 0.0
    %750 = vmatprep.subr.mxu0 0.0
    %751 = vmatpush2.msra.mxu0 0.0
    %752 = vmatprep.mubr.f32.mxu0 0.0
    %753 = vmatmul.mubr.f32.gmra.mxu0 %v629
    %v754 = vpop.f32.mrf.mxu0
    %v755 = vadd.f32 %v531, %v754
    %v756 = vpop.f32.mrf.mxu0
    %757 = vmatprep.mubr.f32.mxu0 0.0
    %758 = vmatmul.mubr.f32.gmra.mxu0 %v632
    %v759 = vpop.f32.mrf.mxu0
    %v760 = vadd.f32 %v536, %v759
    %v761 = vpop.f32.mrf.mxu0
    %762 = vmatprep.mubr.f32.mxu0 0.0
    %763 = vmatmul.mubr.f32.gmra.mxu0 %v635
    %v764 = vpop.f32.mrf.mxu0
    %v765 = vadd.f32 %v541, %v764
    %v766 = vpop.f32.mrf.mxu0
    %767 = vmatprep.mubr.f32.mxu0 0.0
    %768 = vmatmul.mubr.f32.gmra.mxu0 %v638
    %v769 = vpop.f32.mrf.mxu0
    %v770 = vadd.f32 %v546, %v769
    %v771 = vpop.f32.mrf.mxu0
    %772 = vmatprep.mubr.f32.mxu0 0.0
    %773 = vmatmul.mubr.f32.gmra.mxu0 %v641
    %v774 = vpop.f32.mrf.mxu0
    %v775 = vadd.f32 %v551, %v774
    %v776 = vpop.f32.mrf.mxu0
    %777 = vmatprep.mubr.f32.mxu0 0.0
    %778 = vmatmul.mubr.f32.gmra.mxu0 %v644
    %v779 = vpop.f32.mrf.mxu0
    %v780 = vadd.f32 %v556, %v779
    %v781 = vpop.f32.mrf.mxu0
    %782 = vmatprep.mubr.f32.mxu0 0.0
    %783 = vmatmul.mubr.f32.gmra.mxu0 %v647
    %v784 = vpop.f32.mrf.mxu0
    %v785 = vadd.f32 %v561, %v784
    %v786 = vpop.f32.mrf.mxu0
    %787 = vmatprep.mubr.f32.mxu0 0.0
    %788 = vmatmul.mubr.f32.gmra.mxu0 %v650
    %v789 = vpop.f32.mrf.mxu0
    %v790 = vadd.f32 %v566, %v789
    %v791 = vpop.f32.mrf.mxu0
    %792 = vmatprep.mubr.f32.mxu0 0.0
    %793 = vmatmul.mubr.f32.gmra.mxu0 %v653
    %v794 = vpop.f32.mrf.mxu0
    %v795 = vadd.f32 %v571, %v794
    %v796 = vpop.f32.mrf.mxu0
    %797 = vmatprep.mubr.f32.mxu0 0.0
    %798 = vmatmul.mubr.f32.gmra.mxu0 %v656
    %v799 = vpop.f32.mrf.mxu0
    %v800 = vadd.f32 %v576, %v799
    %v801 = vpop.f32.mrf.mxu0
    %802 = vmatprep.mubr.f32.mxu0 0.0
    %803 = vmatmul.mubr.f32.gmra.mxu0 %v659
    %v804 = vpop.f32.mrf.mxu0
    %v805 = vadd.f32 %v581, %v804
    %v806 = vpop.f32.mrf.mxu0
    %807 = vmatprep.mubr.f32.mxu0 0.0
    %808 = vmatmul.mubr.f32.gmra.mxu0 %v662
    %v809 = vpop.f32.mrf.mxu0
    %v810 = vadd.f32 %v586, %v809
    %v811 = vpop.f32.mrf.mxu0
    %812 = vmatprep.mubr.f32.mxu0 0.0
    %813 = vmatmul.mubr.f32.gmra.mxu0 %v665
    %v814 = vpop.f32.mrf.mxu0
    %v815 = vadd.f32 %v591, %v814
    %v816 = vpop.f32.mrf.mxu0
    %817 = vmatprep.mubr.f32.mxu0 0.0
    %818 = vmatmul.mubr.f32.gmra.mxu0 %v668
    %v819 = vpop.f32.mrf.mxu0
    %v820 = vadd.f32 %v596, %v819
    %v821 = vpop.f32.mrf.mxu0
    %822 = vmatprep.mubr.f32.mxu0 0.0
    %823 = vmatmul.mubr.f32.gmra.mxu0 %v671
    %v824 = vpop.f32.mrf.mxu0
    %v825 = vadd.f32 %v601, %v824
    %v826 = vpop.f32.mrf.mxu0
    %827 = vmatprep.mubr.f32.mxu0 0.0
    %828 = vmatmul.mubr.f32.gmra.mxu0 %v674
    %v829 = vpop.f32.mrf.mxu0
    %v830 = vadd.f32 %v606, %v829
    %v831 = vpop.f32.mrf.mxu0
    %832 = vmatprep.mubr.f32.mxu0 0.0
    %833 = vmatmul.mubr.f32.gmra.mxu0 %v677
    %v834 = vpop.f32.mrf.mxu0
    %v835 = vadd.f32 %v611, %v834
    %v836 = vpop.f32.mrf.mxu0
    %837 = vmatprep.mubr.f32.mxu0 0.0
    %838 = vmatmul.mubr.f32.gmra.mxu0 %v680
    %v839 = vpop.f32.mrf.mxu0
    %v840 = vadd.f32 %v616, %v839
    %v841 = vpop.f32.mrf.mxu0
    %842 = vmatprep.mubr.f32.mxu0 0.0
    %843 = vmatmul.mubr.f32.gmra.mxu0 %v683
    %v844 = vpop.f32.mrf.mxu0
    %v845 = vadd.f32 %v621, %v844
    %v846 = vpop.f32.mrf.mxu0
    %847 = vmatprep.mubr.f32.mxu0 0.0
    %848 = vmatmul.mubr.f32.gmra.mxu0 %v686
    %v849 = vpop.f32.mrf.mxu0
    %v850 = vadd.f32 %v626, %v849
    %v851 = vpop.f32.mrf.mxu0
    %852 = vdwg.mxu0
    %v853 = vadd.f32 %v755, 0.0
    %v854 = vadd.f32 %v760, 0.0
    %v855 = vadd.f32 %v765, 0.0
    %v856 = vadd.f32 %v770, 0.0
    %v858 = vlaneseq
    %v859 = vshrl.u32 %v858, 7
    %v860 = vsub.s32 0, %v859
    %v861 = vrot.slane %v42, %v860
    %v863 = vmul.f32 %v775, %v861
    %v864 = vmul.f32 %v780, %v861
    %v865 = vmul.f32 %v785, %v861
    %v866 = vmul.f32 %v790, %v861
    %v867 = vadd.f32 %v853, %v863
    %v868 = vadd.f32 %v854, %v864
    %v869 = vadd.f32 %v855, %v865
    %v870 = vadd.f32 %v856, %v866
    %v872 = vlaneseq
    %v873 = vshrl.u32 %v872, 7
    %v874 = vsub.s32 0, %v873
    %v875 = vrot.slane %v481, %v874
    %v877 = vmul.f32 %v795, %v875
    %v878 = vmul.f32 %v800, %v875
    %v879 = vmul.f32 %v805, %v875
    %v880 = vmul.f32 %v810, %v875
    %v881 = vadd.f32 %v867, %v877
    %v882 = vadd.f32 %v868, %v878
    %v883 = vadd.f32 %v869, %v879
    %v884 = vadd.f32 %v870, %v880
    %v886 = vlaneseq
    %v887 = vshrl.u32 %v886, 7
    %v888 = vsub.s32 0, %v887
    %v889 = vrot.slane %v484, %v888
    %v891 = vmul.f32 %v815, %v889
    %v892 = vmul.f32 %v820, %v889
    %v893 = vmul.f32 %v825, %v889
    %v894 = vmul.f32 %v830, %v889
    %v895 = vadd.f32 %v881, %v891
    %v896 = vadd.f32 %v882, %v892
    %v897 = vadd.f32 %v883, %v893
    %v898 = vadd.f32 %v884, %v894
    %v900 = vlaneseq
    %v901 = vshrl.u32 %v900, 7
    %v902 = vsub.s32 0, %v901
    %v903 = vrot.slane %v487, %v902
    %v905 = vmul.f32 %v835, %v903
    %v906 = vmul.f32 %v840, %v903
    %v907 = vmul.f32 %v845, %v903
    %v908 = vmul.f32 %v850, %v903
    %v909 = vadd.f32 %v895, %v905
    %v910 = vadd.f32 %v896, %v906
    %v911 = vadd.f32 %v897, %v907
    %v912 = vadd.f32 %v898, %v908
    %v913 = vmax.f32 %v909, 0.0
    %v914 = vmax.f32 %v910, 0.0
    %v915 = vmax.f32 %v911, 0.0
    %v916 = vmax.f32 %v912, 0.0
    %v917 = vld [vmem:[%s10] sm:$0x1f]
    %v918 = vld [vmem:[%s11] sm:$0x1f]
    %920 = vset.pattern.permute.xlu0 0
    %921 = vperm.xlu0 %920, %v918
    %v922 = vpop.permute.xlu0 %921
    %v925 = vsel %vm206, %v917, 0
    %927 = vmatprep.subr.mxu0 0.0
    %928 = vmatpush1.msra.mxu0 0.0
    %929 = vmatprep.subr.mxu0 0.0
    %930 = vmatpush1.msra.mxu0 0.0
    %931 = vmatprep.subr.mxu0 0.0
    %932 = vmatpush1.msra.mxu0 0.0
    %933 = vmatprep.subr.mxu0 0.0
    %934 = vmatpush1.msra.mxu0 0.0
    %935 = vmatprep.subr.mxu0 0.0
    %936 = vmatpush1.msra.mxu0 0.0
    %937 = vmatprep.subr.mxu0 0.0
    %938 = vmatpush1.msra.mxu0 0.0
    %939 = vmatprep.subr.mxu0 0.0
    %940 = vmatpush1.msra.mxu0 0.0
    %941 = vmatprep.subr.mxu0 0.0
    %942 = vmatpush1.msra.mxu0 0.0
    %943 = vmatprep.subr.mxu0 0.0
    %944 = vmatpush1.msra.mxu0 0.0
    %945 = vmatprep.subr.mxu0 0.0
    %946 = vmatpush1.msra.mxu0 0.0
    %947 = vmatprep.subr.mxu0 0.0
    %948 = vmatpush1.msra.mxu0 0.0
    %949 = vmatprep.subr.mxu0 0.0
    %950 = vmatpush1.msra.mxu0 0.0
    %951 = vmatprep.subr.mxu0 0.0
    %952 = vmatpush1.msra.mxu0 %v916
    %953 = vmatprep.subr.mxu0 0.0
    %954 = vmatpush1.msra.mxu0 %v915
    %955 = vmatprep.subr.mxu0 0.0
    %956 = vmatpush1.msra.mxu0 %v914
    %957 = vmatprep.subr.mxu0 0.0
    %958 = vmatpush1.msra.mxu0 %v913
    %959 = vmatprep.subr.mxu0 0.0
    %960 = vmatpush2.msra.mxu0 0.0
    %961 = vmatprep.subr.mxu0 0.0
    %962 = vmatpush2.msra.mxu0 0.0
    %963 = vmatprep.subr.mxu0 0.0
    %964 = vmatpush2.msra.mxu0 0.0
    %965 = vmatprep.subr.mxu0 0.0
    %966 = vmatpush2.msra.mxu0 0.0
    %967 = vmatprep.subr.mxu0 0.0
    %968 = vmatpush2.msra.mxu0 0.0
    %969 = vmatprep.subr.mxu0 0.0
    %970 = vmatpush2.msra.mxu0 0.0
    %971 = vmatprep.subr.mxu0 0.0
    %972 = vmatpush2.msra.mxu0 0.0
    %973 = vmatprep.subr.mxu0 0.0
    %974 = vmatpush2.msra.mxu0 0.0
    %975 = vmatprep.subr.mxu0 0.0
    %976 = vmatpush2.msra.mxu0 0.0
    %977 = vmatprep.subr.mxu0 0.0
    %978 = vmatpush2.msra.mxu0 0.0
    %979 = vmatprep.subr.mxu0 0.0
    %980 = vmatpush2.msra.mxu0 0.0
    %981 = vmatprep.subr.mxu0 0.0
    %982 = vmatpush2.msra.mxu0 0.0
    %983 = vmatprep.subr.mxu0 0.0
    %984 = vmatpush2.msra.mxu0 0.0
    %985 = vmatprep.subr.mxu0 0.0
    %986 = vmatpush2.msra.mxu0 0.0
    %987 = vmatprep.subr.mxu0 0.0
    %988 = vmatpush2.msra.mxu0 0.0
    %989 = vmatprep.subr.mxu0 0.0
    %990 = vmatpush2.msra.mxu0 0.0
    %991 = vmatprep.mubr.f32.mxu0 0.0
    %992 = vmatmul.mubr.f32.gmra.mxu0 %v925
    %v993 = vpop.f32.mrf.mxu0
    %v994 = vadd.f32 %v922, %v993
    %v995 = vpop.f32.mrf.mxu0
    %996 = vdwg.mxu0
    %vm997 = vcmask 1040384
    %v998 = vsel %vm997, 1.0, %v861
    %vm999 = vcmask 1041408
    %v1000 = vsel %vm999, %v998, %v875
    %v1001 = vsel %vm403, %v1000, %v889
    %vm1002 = vcmask 1043456
    %v1003 = vsel %vm1002, %v1001, %v903
    %v1004 = vmul.f32 %v994, %v1003
    %vm1005 = vcmask 1044480
    %v1006 = vsel %vm1005, %v1004, 0.0
    %v1007 = vrot.slane %v1006, 4
    %v1008 = vadd.f32 %v1006, %v1007
    %v1009 = vrot.slane %v1008, 2
    %v1010 = vadd.f32 %v1008, %v1009
    %v1011 = vrot.slane %v1010, 1
    %v1012 = vadd.f32 %v1010, %v1011
    %v1013 = vsel %vm997, %v480, %v1012
    %1014 = vst [vmem:[#allocation2] sm:$0x3] %v1013
    // Predicated region
    $region50: #{tpu_custom_call.1} parent=1 // pred_check
      _
    $region51: #{tpu_custom_call.1} parent=1 // pred_check_branch
      %1016 = sbr.rel (0) target = $region53
    $region52: #{tpu_custom_call.1} parent=1 // pred_region
      %s1018 = ssub.s32 32, 32
      %1019 = vsyncadd [#allocation3], %s1018
      %s1021 = sshll.u32 [#allocation2], 4
      %s1022 = int_to_ptr.vmem [resolvable:$true] %s1021
      %1024 = dma.vmem_to_hbm [thread:$0]  %s1022, 32, %s12, [#allocation3]
    $region53: #{tpu_custom_call.1} parent=1 // pred_fallthru
      _
    // Predicated region
    $region54: #{tpu_custom_call.1} parent=1 // pred_check
      _
    $region55: #{tpu_custom_call.1} parent=1 // pred_check_branch
      %1026 = sbr.rel (0) target = $region57
    $region56: #{tpu_custom_call.1} parent=1 // pred_region
      %1027 = dma.done [#allocation3], 32
    $region57: #{tpu_custom_call.1} parent=1 // pred_fallthru
      _
    %1028 = vsyncpa [#allocation3], 1

</llo_original>
